<compile_context>
chip_gen: v6e
topology: v6e:2x2x1
jax: 0.10.0
libtpu: 0.0.40
codegen_flags: <defaults>
</compile_context>

<pallas_src>
import functools

import jax
import jax.numpy as jnp
from jax.experimental import pallas as pl
from jax.experimental.pallas import tpu as pltpu


def _round_up(x, m):
    return (x + m - 1) // m * m


def _cdiv(a, b):
    return -(-a // b)


def _lsce_kernel(t_ref, p_ref, out_ref, acc_smooth, acc_nll, *,
                 block_rows, n_valid, n_classes, needs_mask, target_resident):
    s = pl.program_id(0)            # batch split (parallel -> v7x megacore)
    k = pl.program_id(1)            # step within split (reduction axis)
    n_steps = pl.num_programs(1)

    @pl.when(k == 0)
    def _init():
        acc_smooth[...] = jnp.zeros_like(acc_smooth)
        acc_nll[...] = jnp.zeros_like(acc_nll)

    # Cast on-chip so bf16 inputs only pay half the HBM traffic.
    x = p_ref[...].astype(jnp.float32)                          # (bn, C)

    # Row-wise pieces of the log-softmax; log_preds itself is never built.
    m = jnp.max(x, axis=-1, keepdims=True)                      # (bn, 1)
    lse = jnp.log(jnp.sum(jnp.exp(x - m), axis=-1, keepdims=True))
    mls = m + lse                                               # (bn, 1)
    sum_x = jnp.sum(x, axis=-1, keepdims=True)                  # (bn, 1)

    # Global starting row of this tile (unclamped -> drives the validity mask).
    row0 = (s * n_steps + k) * block_rows
    row0 = pl.multiple_of(row0, 8)

    # Gather x[i, target[i]] with a predicated select on the raw logits.
    if target_resident:
        tgt = t_ref[pl.ds(row0, block_rows), :]                 # (bn, 1) int32
    else:
        tgt = t_ref[...]                                        # (bn, 1) int32
    cls = jax.lax.broadcasted_iota(jnp.int32, x.shape, 1)
    gathered = jnp.sum(jnp.where(cls == tgt, x, 0.0),
                       axis=-1, keepdims=True)                  # (bn, 1)

    smooth_c = jnp.float32(n_classes) * mls - sum_x             # -sum_c log_preds
    nll_c = mls - gathered                                      # -log_preds[i, t_i]

    if needs_mask:
        rows = row0 + jax.lax.broadcasted_iota(jnp.int32, (block_rows, 1), 0)
        valid = rows < n_valid
        smooth_c = jnp.where(valid, smooth_c, 0.0)
        nll_c = jnp.where(valid, nll_c, 0.0)

    # Per-row vector accumulation (VPU adds only); the cross-lane reduce
    # happens once per split in the finalize branch.
    acc_smooth[...] += smooth_c
    acc_nll[...] += nll_c

    @pl.when(k == n_steps - 1)
    def _finalize():
        smooth_total = jnp.sum(acc_smooth[...])
        nll_total = jnp.sum(acc_nll[...])
        sub = jax.lax.broadcasted_iota(jnp.int32, out_ref.shape, 1)
        lane = jax.lax.broadcasted_iota(jnp.int32, out_ref.shape, 2)
        out_ref[...] = jnp.where(
            (sub == 0) & (lane == 0), smooth_total,
            jnp.where((sub == 0) & (lane == 1), nll_total, jnp.float32(0.0)))


def label_smoothing_cross_entropy(preds, target, *, smoothing=0.1,
                                  reduction="mean", block_rows=None,
                                  num_splits=None):
    """Pallas implementation of LabelSmoothingCrossEntropy.forward."""
    assert 0 <= smoothing < 1
    assert reduction in ("mean", "sum")
    # TODO(synk): reduction='none' (per-sample loss tensor) and the per-class
    # `weight` tensor are not implemented; module defaults are
    # reduction='mean', weight=None.
    n, c = preds.shape
    itemsize = jnp.dtype(preds.dtype).itemsize

    # ---- batch tile: target ~4 MiB of preds per grid step -------------------
    if block_rows is None:
        tile_budget = 4 * 1024 * 1024
        block_rows = tile_budget // max(1, c * itemsize)
    # Cap so the (double buffered) tile always fits comfortably in scoped VMEM
    # on every generation (v5e/v6e 128 MiB, v7x 64 MiB physical).
    vmem_cap_rows = max(8, (8 * 1024 * 1024) // max(1, c * itemsize) // 8 * 8)
    block_rows = max(8, (block_rows // 8) * 8)
    block_rows = min(block_rows, vmem_cap_rows, 1024, _round_up(n, 8))

    n_tiles = _cdiv(n, block_rows)
    if num_splits is None:
        # Leading "parallel" axis -> sharded across the 2 TensorCores on v7x;
        # just an outer loop on single-core chips.
        num_splits = 2 if n_tiles >= 2 else 1
    steps_per_split = _cdiv(n_tiles, num_splits)
    total_rows = num_splits * steps_per_split * block_rows
    needs_mask = total_rows != n
    last_tile = n_tiles - 1

    # No padding copy of preds (it is consumed in place); only the tiny int32
    # target vector is padded to the over-covered grid extent.
    target_2d = jnp.pad(target.astype(jnp.int32),
                        (0, total_rows - n)).reshape(total_rows, 1)

    # Keep the whole target vector VMEM-resident (one DMA) unless the batch is
    # huge; otherwise fall back to a small per-step block.
    target_resident = total_rows <= 8192
    if target_resident:
        target_spec = pl.BlockSpec((total_rows, 1), lambda s, k: (0, 0))
    else:
        target_spec = pl.BlockSpec(
            (block_rows, 1), lambda s, k: (s * steps_per_split + k, 0))

    # Clamp the preds block index so grid over-coverage never reads a fully
    # out-of-range block; the duplicated tile is zeroed by the row mask.
    preds_spec = pl.BlockSpec(
        (block_rows, c),
        lambda s, k: (jnp.minimum(s * steps_per_split + k, last_tile), 0))

    kernel = functools.partial(
        _lsce_kernel,
        block_rows=block_rows,
        n_valid=n,
        n_classes=c,
        needs_mask=needs_mask,
        target_resident=target_resident,
    )

    partials = pl.pallas_call(
        kernel,
        out_shape=jax.ShapeDtypeStruct((num_splits, 8, 128), jnp.float32),
        grid_spec=pltpu.PrefetchScalarGridSpec(
            num_scalar_prefetch=0,
            grid=(num_splits, steps_per_split),
            in_specs=[target_spec, preds_spec],
            out_specs=pl.BlockSpec((1, 8, 128), lambda s, k: (s, 0, 0)),
            scratch_shapes=[
                pltpu.VMEM((block_rows, 1), jnp.float32),   # sum -sum_c log_preds
                pltpu.VMEM((block_rows, 1), jnp.float32),   # sum nll terms
            ],
        ),
        compiler_params=pltpu.CompilerParams(
            dimension_semantics=("parallel", "arbitrary"),
            vmem_limit_bytes=32 * 1024 * 1024,
        ),
    )(target_2d, preds)

    smooth_sum = jnp.sum(partials[:, 0, 0])
    nll_sum = jnp.sum(partials[:, 0, 1])
    denom = jnp.float32(n) if reduction == "mean" else jnp.float32(1.0)
    loss = smooth_sum / denom
    nll = nll_sum / denom
    return smoothing * (loss / jnp.float32(c)) + (1.0 - smoothing) * nll


def _reference(preds, target, smoothing=0.1, reduction="mean"):
    """Pure-JAX reference mirroring the PyTorch module."""
    log_preds = jax.nn.log_softmax(preds.astype(jnp.float32), axis=-1)
    c = preds.shape[-1]
    red = jnp.mean if reduction == "mean" else jnp.sum
    loss = red(-jnp.sum(log_preds, axis=-1))
    nll = red(-jnp.take_along_axis(
        log_preds, target[:, None].astype(jnp.int32), axis=-1)[:, 0])
    return smoothing * (loss / c) + (1.0 - smoothing) * nll


if __name__ == "__main__":
    key = jax.random.PRNGKey(0)
    k1, k2, k3, k4, k5, k6 = jax.random.split(key, 6)

    # 1) small f32 case: non-tile-aligned batch -> masked last tile,
    #    2-way split, multi-step grid.
    n1, c1 = 30, 16
    preds1 = jax.random.normal(k1, (n1, c1), dtype=jnp.float32)
    target1 = jax.random.randint(k2, (n1,), 0, c1, dtype=jnp.int32)
    out1 = jax.block_until_ready(
        label_smoothing_cross_entropy(preds1, target1, smoothing=0.1,
                                      reduction="mean", block_rows=8))
    ref1 = _reference(preds1, target1, smoothing=0.1, reduction="mean")
    assert jnp.allclose(out1, ref1, rtol=1e-5, atol=1e-5), (out1, ref1)

    # 1b) reduction='sum' on the same data
    out1s = jax.block_until_ready(
        label_smoothing_cross_entropy(preds1, target1, smoothing=0.1,
                                      reduction="sum", block_rows=8))
    ref1s = _reference(preds1, target1, smoothing=0.1, reduction="sum")
    assert jnp.allclose(out1s, ref1s, rtol=1e-5, atol=1e-4), (out1s, ref1s)

    # 2) odd tile count -> exercises the clamped (redundant) last block of the
    #    second split plus row masking.
    n2, c2 = 40, 256
    preds2 = jax.random.normal(k3, (n2, c2), dtype=jnp.float32)
    target2 = jax.random.randint(k4, (n2,), 0, c2, dtype=jnp.int32)
    out2 = jax.block_until_ready(
        label_smoothing_cross_entropy(preds2, target2, smoothing=0.1,
                                      block_rows=16))
    ref2 = _reference(preds2, target2, smoothing=0.1)
    assert jnp.allclose(out2, ref2, rtol=1e-5, atol=1e-5), (out2, ref2)

    # 3) default (auto) tiling, lane-dense C=128
    n3, c3 = 16, 128
    preds3 = jax.random.normal(k5, (n3, c3), dtype=jnp.float32)
    target3 = jax.random.randint(k6, (n3,), 0, c3, dtype=jnp.int32)
    out3 = jax.block_until_ready(
        label_smoothing_cross_entropy(preds3, target3, smoothing=0.1))
    ref3 = _reference(preds3, target3, smoothing=0.1)
    assert jnp.allclose(out3, ref3, rtol=1e-5, atol=1e-5), (out3, ref3)

    # 4) bf16 logits (cast happens on-chip inside the kernel)
    preds4 = preds3.astype(jnp.bfloat16)
    out4 = jax.block_until_ready(
        label_smoothing_cross_entropy(preds4, target3, smoothing=0.1))
    ref4 = _reference(preds4, target3, smoothing=0.1)
    assert jnp.allclose(out4, ref4, rtol=1e-5, atol=1e-4), (out4, ref4)

    print("KERNEL_OK")
</pallas_src>

<mosaic_0001>
module attributes {stable_mosaic.version = 11 : i64} {
  func.func @_lsce_kernel(%arg0: i32, %arg1: i32, %arg2: memref<32x1xi32, #tpu.memory_space<vmem>>, %arg3: memref<8x16xf32, #tpu.memory_space<vmem>>, %arg4: memref<1x8x128xf32, #tpu.memory_space<vmem>>, %arg5: memref<8x1xf32, #tpu.memory_space<vmem>>, %arg6: memref<8x1xf32, #tpu.memory_space<vmem>>) attributes {dimension_semantics = [#tpu.dimension_semantics<parallel>, #tpu.dimension_semantics<arbitrary>], iteration_bounds = array<i64: 2, 2>, scalar_prefetch = 0 : i64, scratch_operands = 2 : i64, tpu.core_type = #tpu.core_type<tc>, window_params = [{pipeline_mode = #tpu.pipeline_mode<synchronous>, transform_indices = @transform_0, window_bounds = array<i64: 32, 1>}, {transform_indices = @transform_1, window_bounds = array<i64: 8, 16>}, {transform_indices = @transform_2, window_bounds = array<i64: 1, 8, 128>}]} {
    %c0_i32 = arith.constant 0 : i32
    %0 = arith.cmpi eq, %arg1, %c0_i32 : i32
    %1 = arith.extui %0 : i1 to i32
    %c0_i32_0 = arith.constant 0 : i32
    %2 = arith.cmpi ne, %1, %c0_i32_0 : i32
    scf.if %2 {
      %cst_19 = arith.constant 0.000000e+00 : f32
      %50 = vector.broadcast %cst_19 : f32 to vector<8x1xf32>
      %c0_20 = arith.constant 0 : index
      %c0_21 = arith.constant 0 : index
      %51 = vector.load %arg5[%c0_20, %c0_21] : memref<8x1xf32, #tpu.memory_space<vmem>>, vector<8x1xf32>
      tpu.vector_store %arg5[%c0_20, %c0_21], %50 {strides = array<i32>} : memref<8x1xf32, #tpu.memory_space<vmem>>, vector<8x1xf32>,
      %cst_22 = arith.constant 0.000000e+00 : f32
      %52 = vector.broadcast %cst_22 : f32 to vector<8x1xf32>
      %c0_23 = arith.constant 0 : index
      %c0_24 = arith.constant 0 : index
      %53 = vector.load %arg6[%c0_23, %c0_24] : memref<8x1xf32, #tpu.memory_space<vmem>>, vector<8x1xf32>
      tpu.vector_store %arg6[%c0_23, %c0_24], %52 {strides = array<i32>} : memref<8x1xf32, #tpu.memory_space<vmem>>, vector<8x1xf32>,
    } else {
    }
    %c0 = arith.constant 0 : index
    %c0_1 = arith.constant 0 : index
    %3 = vector.load %arg3[%c0, %c0_1] : memref<8x16xf32, #tpu.memory_space<vmem>>, vector<8x16xf32>
    %cst = arith.constant dense<0xFF800000> : vector<8xf32>
    %4 = vector.multi_reduction <maximumf>, %3, %cst [1] : vector<8x16xf32> to vector<8xf32>
    %5 = vector.shape_cast %4 : vector<8xf32> to vector<8x1xf32>
    %6 = vector.broadcast %5 : vector<8x1xf32> to vector<8x16xf32>
    %7 = arith.subf %3, %6 : vector<8x16xf32>
    %8 = math.exp %7 : vector<8x16xf32>
    %cst_2 = arith.constant dense<0.000000e+00> : vector<8xf32>
    %9 = vector.multi_reduction <add>, %8, %cst_2 [1] : vector<8x16xf32> to vector<8xf32>
    %10 = vector.shape_cast %9 : vector<8xf32> to vector<8x1xf32>
    %11 = math.log %10 : vector<8x1xf32>
    %12 = arith.addf %5, %11 : vector<8x1xf32>
    %cst_3 = arith.constant dense<0.000000e+00> : vector<8xf32>
    %13 = vector.multi_reduction <add>, %3, %cst_3 [1] : vector<8x16xf32> to vector<8xf32>
    %14 = vector.shape_cast %13 : vector<8xf32> to vector<8x1xf32>
    %c2_i32 = arith.constant 2 : i32
    %15 = arith.muli %arg0, %c2_i32 : i32
    %16 = arith.addi %15, %arg1 : i32
    %c8_i32 = arith.constant 8 : i32
    %17 = arith.muli %16, %c8_i32 : i32
    %18 = tpu.assume_multiple %17, 8 : i32
    %19 = arith.index_cast %18 : i32 to index
    %c0_4 = arith.constant 0 : index
    %20 = vector.load %arg2[%19, %c0_4] : memref<32x1xi32, #tpu.memory_space<vmem>>, vector<8x1xi32>
    %21 = tpu.iota {dimensions = array<i32: 1>} : vector<8x16xi32>
    %22 = vector.broadcast %20 : vector<8x1xi32> to vector<8x16xi32>
    %23 = arith.cmpi eq, %21, %22 : vector<8x16xi32>
    %cst_5 = arith.constant 0.000000e+00 : f32
    %24 = vector.broadcast %cst_5 : f32 to vector<8x16xf32>
    %25 = arith.select %23, %3, %24 : vector<8x16xi1>, vector<8x16xf32>
    %cst_6 = arith.constant dense<0.000000e+00> : vector<8xf32>
    %26 = vector.multi_reduction <add>, %25, %cst_6 [1] : vector<8x16xf32> to vector<8xf32>
    %27 = vector.shape_cast %26 : vector<8xf32> to vector<8x1xf32>
    %cst_7 = arith.constant 1.600000e+01 : f32
    %28 = vector.broadcast %cst_7 : f32 to vector<8x1xf32>
    %29 = arith.mulf %28, %12 : vector<8x1xf32>
    %30 = arith.subf %29, %14 : vector<8x1xf32>
    %31 = arith.subf %12, %27 : vector<8x1xf32>
    %32 = tpu.iota {dimensions = array<i32: 0>} : vector<8x1xi32>
    %33 = vector.broadcast %18 : i32 to vector<8x1xi32>
    %34 = arith.addi %33, %32 : vector<8x1xi32>
    %c30_i32 = arith.constant 30 : i32
    %35 = vector.broadcast %c30_i32 : i32 to vector<8x1xi32>
    %36 = arith.cmpi slt, %34, %35 : vector<8x1xi32>
    %cst_8 = arith.constant 0.000000e+00 : f32
    %37 = vector.broadcast %cst_8 : f32 to vector<8x1xf32>
    %38 = arith.select %36, %30, %37 : vector<8x1xi1>, vector<8x1xf32>
    %cst_9 = arith.constant 0.000000e+00 : f32
    %39 = vector.broadcast %cst_9 : f32 to vector<8x1xf32>
    %40 = arith.select %36, %31, %39 : vector<8x1xi1>, vector<8x1xf32>
    %c0_10 = arith.constant 0 : index
    %c0_11 = arith.constant 0 : index
    %41 = vector.load %arg5[%c0_10, %c0_11] : memref<8x1xf32, #tpu.memory_space<vmem>>, vector<8x1xf32>
    %42 = arith.addf %41, %38 : vector<8x1xf32>
    %c0_12 = arith.constant 0 : index
    %c0_13 = arith.constant 0 : index
    %43 = vector.load %arg5[%c0_12, %c0_13] : memref<8x1xf32, #tpu.memory_space<vmem>>, vector<8x1xf32>
    tpu.vector_store %arg5[%c0_12, %c0_13], %42 {strides = array<i32>} : memref<8x1xf32, #tpu.memory_space<vmem>>, vector<8x1xf32>,
    %c0_14 = arith.constant 0 : index
    %c0_15 = arith.constant 0 : index
    %44 = vector.load %arg6[%c0_14, %c0_15] : memref<8x1xf32, #tpu.memory_space<vmem>>, vector<8x1xf32>
    %45 = arith.addf %44, %40 : vector<8x1xf32>
    %c0_16 = arith.constant 0 : index
    %c0_17 = arith.constant 0 : index
    %46 = vector.load %arg6[%c0_16, %c0_17] : memref<8x1xf32, #tpu.memory_space<vmem>>, vector<8x1xf32>
    tpu.vector_store %arg6[%c0_16, %c0_17], %45 {strides = array<i32>} : memref<8x1xf32, #tpu.memory_space<vmem>>, vector<8x1xf32>,
    %c1_i32 = arith.constant 1 : i32
    %47 = arith.cmpi eq, %arg1, %c1_i32 : i32
    %48 = arith.extui %47 : i1 to i32
    %c0_i32_18 = arith.constant 0 : i32
    %49 = arith.cmpi ne, %48, %c0_i32_18 : i32
    scf.if %49 {
      %c0_19 = arith.constant 0 : index
      %c0_20 = arith.constant 0 : index
      %50 = vector.load %arg5[%c0_19, %c0_20] : memref<8x1xf32, #tpu.memory_space<vmem>>, vector<8x1xf32>
      %51 = vector.shape_cast %50 : vector<8x1xf32> to vector<1x8x1xf32>
      %cst_21 = arith.constant dense<0.000000e+00> : vector<1xf32>
      %52 = vector.multi_reduction <add>, %51, %cst_21 [1, 2] : vector<1x8x1xf32> to vector<1xf32>
      %53 = vector.shape_cast %52 : vector<1xf32> to vector<1x1x1xf32>
      %54 = vector.extract %53[0, 0, 0] : f32 from vector<1x1x1xf32>
      %c0_22 = arith.constant 0 : index
      %c0_23 = arith.constant 0 : index
      %55 = vector.load %arg6[%c0_22, %c0_23] : memref<8x1xf32, #tpu.memory_space<vmem>>, vector<8x1xf32>
      %56 = vector.shape_cast %55 : vector<8x1xf32> to vector<1x8x1xf32>
      %cst_24 = arith.constant dense<0.000000e+00> : vector<1xf32>
      %57 = vector.multi_reduction <add>, %56, %cst_24 [1, 2] : vector<1x8x1xf32> to vector<1xf32>
      %58 = vector.shape_cast %57 : vector<1xf32> to vector<1x1x1xf32>
      %59 = vector.extract %58[0, 0, 0] : f32 from vector<1x1x1xf32>
      %60 = tpu.iota {dimensions = array<i32: 1>} : vector<1x8x128xi32>
      %61 = tpu.iota {dimensions = array<i32: 2>} : vector<1x8x128xi32>
      %c0_i32_25 = arith.constant 0 : i32
      %62 = vector.broadcast %c0_i32_25 : i32 to vector<1x8x128xi32>
      %63 = arith.cmpi eq, %60, %62 : vector<1x8x128xi32>
      %c0_i32_26 = arith.constant 0 : i32
      %64 = vector.broadcast %c0_i32_26 : i32 to vector<1x8x128xi32>
      %65 = arith.cmpi eq, %61, %64 : vector<1x8x128xi32>
      %66 = arith.andi %63, %65 : vector<1x8x128xi1>
      %c0_i32_27 = arith.constant 0 : i32
      %67 = vector.broadcast %c0_i32_27 : i32 to vector<1x8x128xi32>
      %68 = arith.cmpi eq, %60, %67 : vector<1x8x128xi32>
      %c1_i32_28 = arith.constant 1 : i32
      %69 = vector.broadcast %c1_i32_28 : i32 to vector<1x8x128xi32>
      %70 = arith.cmpi eq, %61, %69 : vector<1x8x128xi32>
      %71 = arith.andi %68, %70 : vector<1x8x128xi1>
      %cst_29 = arith.constant 0.000000e+00 : f32
      %72 = vector.broadcast %59 : f32 to vector<1x8x128xf32>
      %73 = vector.broadcast %cst_29 : f32 to vector<1x8x128xf32>
      %74 = arith.select %71, %72, %73 : vector<1x8x128xi1>, vector<1x8x128xf32>
      %75 = vector.broadcast %54 : f32 to vector<1x8x128xf32>
      %76 = arith.select %66, %75, %74 : vector<1x8x128xi1>, vector<1x8x128xf32>
      %c0_30 = arith.constant 0 : index
      %c0_31 = arith.constant 0 : index
      %c0_32 = arith.constant 0 : index
      %77 = vector.load %arg4[%c0_30, %c0_31, %c0_32] : memref<1x8x128xf32, #tpu.memory_space<vmem>>, vector<1x8x128xf32>
      tpu.vector_store %arg4[%c0_30, %c0_31, %c0_32], %76 {strides = array<i32>} : memref<1x8x128xf32, #tpu.memory_space<vmem>>, vector<1x8x128xf32>,
    } else {
    }
    return
  }
  func.func @transform_0(%arg0: i32, %arg1: i32) -> (i32, i32) {
    %c0_i32 = arith.constant 0 : i32
    %c0_i32_0 = arith.constant 0 : i32
    %c0_i32_1 = arith.constant 0 : i32
    return %c0_i32, %c0_i32_0 : i32, i32
  }
  func.func @transform_1(%arg0: i32, %arg1: i32) -> (i32, i32) {
    %c2_i32 = arith.constant 2 : i32
    %0 = arith.muli %arg0, %c2_i32 : i32
    %1 = arith.addi %0, %arg1 : i32
    %c3_i32 = arith.constant 3 : i32
    %2 = arith.minsi %1, %c3_i32 : i32
    %c0_i32 = arith.constant 0 : i32
    %c0_i32_0 = arith.constant 0 : i32
    return %2, %c0_i32 : i32, i32
  }
  func.func @transform_2(%arg0: i32, %arg1: i32) -> (i32, i32, i32) {
    %c0_i32 = arith.constant 0 : i32
    %c0_i32_0 = arith.constant 0 : i32
    %c0_i32_1 = arith.constant 0 : i32
    return %arg0, %c0_i32, %c0_i32_0 : i32, i32, i32
  }
}

</mosaic_0001>

<llo_original>
// kernel: tpu_custom_call.1
$region0: #{tpu_custom_call.1}
  #allocation0 [shape = 'u32[]', space=smem, size = 0x4, offset = 0x4, fixed_abs, tag = 'smem constant byte address 0x4 - core index']
  #allocation1 [shape = 'u32[144,128]{1,0:T(1,128)}', space=vmem, size = 0x12000, scoped, tag = 'internal scratch']
  #allocation2 [shape = 'f32[8,1]{1,0:T(8,128)}', space=vmem, size = 0x1000, scoped, tag = 'scratch operand']
  #allocation3 [shape = 'f32[8,1]{1,0:T(8,128)}', space=vmem, size = 0x1000, scoped, tag = 'scratch operand']
  %s0 = inlined_call_operand.vmem [shape: s32[32,1], index: 0, kind: input, shape index: {}]
  %s1 = inlined_call_operand.vmem [shape: f32[30,16], index: 1, kind: input, shape index: {}]
  %s2 = inlined_call_operand.hbm [shape: f32[2,8,128], index: 2, kind: output, shape index: {}]
  %s3 = sld [smem:[#allocation0]]
  $region49: #{tpu_custom_call.1} parent=0
    _
  %s5 = ssub.s32 1, %s3
  %s6 = scalar_select 0, %s5, %s3
  $region1: #{tpu_custom_call.1} parent=0
    #allocation4 [shape = 'u8[8192]{0}', space=vmem, size = 0x2000, scoped, tag = 'output window, operand 0']
    #allocation5 [shape = 's32[2]{0}', space=sflag, size = 0x8, scoped, tag = 'scoped memory for tpu_custom_call.1']
    %7 = vsyncpa [#allocation5], 0
    %s8 = scalar_lea.sflag [#allocation5], 1
    %9 = vsyncpa %s8, 0
    loop: start=0, step=1, limit=6
    $region2: #{tpu_custom_call.1} parent=1 // loop_pre_header
      _
    $region3: #{tpu_custom_call.1} parent=1 // loop_header
      %s11 = sphi 0, %s15
      %p12 = scmp.ge.s32.totalorder %s11, 6
      %s18 = sphi 0, %s30
      %s19 = sphi 0, %s26
      %s20 = sphi 0, %s18
      %s21 = sphi 0, %s19
      %s22 = sphi 0, %s20
      %s23 = sphi 0, %s21
      %s31 = sphi 0, %s31
      %s33 = sphi 0, %s31
      %s34 = sphi 0, %s33
      %s48 = sphi 0, %s34
      %s62 = sphi 0, %s64
      %s65 = sphi 0, %s62
      %s66 = sphi 0, %s65
      %s82 = sphi 0, %s66
      %s88 = sphi 0, %s90
      %s91 = sphi 0, %s88
      %s92 = sphi 0, %s91
      %s108 = sphi 0, %s92
    $region4: #{tpu_custom_call.1} parent=1 // loop_header_branch
      %14 = sbr.rel (%p12) target = $region8
    $region5: #{tpu_custom_call.1} parent=1 // loop_body
      %s16 = ssub.s32 %s11, 1
      %s17 = ssub.s32 %s11, 2
      %s24 = sadd.s32 1, %s19
      %p25 = scmp.ge.s32.totalorder %s24, 2
      %s26 = scalar_select %p25, 0, %s24
      %s27 = sadd.s32 1, %s18
      %s28 = scalar_select %p25, %s27, %s18
      %p29 = scmp.ge.s32.totalorder %s28, 2
      %s30 = scalar_select %p29, 0, %s28
      %s32 = sadd.s32 %s31, 1
      %p35 = scmp.eq.s32.totalorder %s11, 3
      %p36 = scmp.ne.s32.totalorder %s31, %s33
      %p37 = scmp.eq.s32.totalorder %s11, 0
      %p38 = por %p36, %p37
      %p39 = scmp.ne.s32.totalorder %s31, %s33
      %p40 = scmp.eq.s32.totalorder %s16, 3
      %p41 = por %p39, %p40
      %p42 = scmp.ne.s32.totalorder %s33, %s34
      %p43 = scmp.eq.s32.totalorder %s16, 0
      %p44 = por %p42, %p43
      %p45 = scmp.ne.s32.totalorder %s33, %s34
      %p46 = scmp.eq.s32.totalorder %s17, 3
      %p47 = por %p45, %p46
      %p49 = scmp.ne.s32.totalorder %s34, %s48
      %p50 = scmp.eq.s32.totalorder %s17, 0
      %p51 = por %p49, %p50
      %s52 = smul.u32 %s18, 2
      %s53 = sadd.s32 %s52, %s19
      %p54 = scmp.lt.s32.totalorder %s53, 3
      %s55 = scalar_select %p54, %s53, 3
      %s56 = smul.u32 %s30, 2
      %s57 = sadd.s32 %s56, %s26
      %p58 = scmp.lt.s32.totalorder %s57, 3
      %s59 = scalar_select %p58, %s57, 3
      %s60 = ssub.s32 %s55, %s59
      %p61 = scmp.eq.s32.totalorder %s60, 0
      %s63 = sadd.s32 %s62, 1
      %s64 = scalar_select %p61, %s62, %s63
      %p67 = pneg %p61
      %p68 = scmp.eq.s32.totalorder %s11, 3
      %p69 = por %p67, %p68
      %p70 = scmp.ne.s32.totalorder %s62, %s65
      %p71 = scmp.eq.s32.totalorder %s11, 0
      %p72 = por %p70, %p71
      %p73 = scmp.ne.s32.totalorder %s62, %s65
      %p74 = scmp.eq.s32.totalorder %s16, 3
      %p75 = por %p73, %p74
      %p76 = scmp.ne.s32.totalorder %s65, %s66
      %p77 = scmp.eq.s32.totalorder %s16, 0
      %p78 = por %p76, %p77
      %p79 = scmp.ne.s32.totalorder %s65, %s66
      %p80 = scmp.eq.s32.totalorder %s17, 3
      %p81 = por %p79, %p80
      %p83 = scmp.ne.s32.totalorder %s66, %s82
      %p84 = scmp.eq.s32.totalorder %s17, 0
      %p85 = por %p83, %p84
      %s86 = ssub.s32 %s18, %s30
      %p87 = scmp.eq.s32.totalorder %s86, 0
      %s89 = sadd.s32 %s88, 1
      %s90 = scalar_select %p87, %s88, %s89
      %p93 = pneg %p87
      %p94 = scmp.eq.s32.totalorder %s11, 3
      %p95 = por %p93, %p94
      %p96 = scmp.ne.s32.totalorder %s88, %s91
      %p97 = scmp.eq.s32.totalorder %s11, 0
      %p98 = por %p96, %p97
      %p99 = scmp.ne.s32.totalorder %s88, %s91
      %p100 = scmp.eq.s32.totalorder %s16, 3
      %p101 = por %p99, %p100
      %p102 = scmp.ne.s32.totalorder %s91, %s92
      %p103 = scmp.eq.s32.totalorder %s16, 0
      %p104 = por %p102, %p103
      %p105 = scmp.ne.s32.totalorder %s91, %s92
      %p106 = scmp.eq.s32.totalorder %s17, 3
      %p107 = por %p105, %p106
      %p109 = scmp.ne.s32.totalorder %s92, %s108
      %p110 = scmp.eq.s32.totalorder %s17, 0
      %p111 = por %p109, %p110
      %p112 = scmp.le.s32.totalorder 1, %s11
      %p113 = scmp.lt.s32.totalorder %s11, 5
      %p114 = pnand %p112, %p113
      %p115 = pneg %p114
      // Predicated region
      $region9: #{tpu_custom_call.1} parent=5 // pred_check
        _
      $region10: #{tpu_custom_call.1} parent=5 // pred_check_branch
        %117 = sbr.rel (%p114) target = $region12
      $region11: #{tpu_custom_call.1} parent=5 // pred_region
        %s118 = ssub.s32 %s11, 1
        // Predicated region
        $region13: #{tpu_custom_call.1} parent=11 // pred_check
          %p119 = pneg %p44
        $region14: #{tpu_custom_call.1} parent=11 // pred_check_branch
          %121 = sbr.rel (%p119) target = $region16
        $region15: #{tpu_custom_call.1} parent=11 // pred_region
          _
        $region16: #{tpu_custom_call.1} parent=11 // pred_fallthru
          _
      $region12: #{tpu_custom_call.1} parent=5 // pred_fallthru
        _
      %p122 = scmp.lt.s32.totalorder %s11, 4
      // Predicated region
      $region17: #{tpu_custom_call.1} parent=5 // pred_check
        %p123 = pneg %p122
      $region18: #{tpu_custom_call.1} parent=5 // pred_check_branch
        %125 = sbr.rel (%p123) target = $region20
      $region19: #{tpu_custom_call.1} parent=5 // pred_region
        // Predicated region
        $region21: #{tpu_custom_call.1} parent=19 // pred_check
          %p126 = pneg %p72
        $region22: #{tpu_custom_call.1} parent=19 // pred_check_branch
          %128 = sbr.rel (%p126) target = $region24
        $region23: #{tpu_custom_call.1} parent=19 // pred_region
          %s129 = smul.u32 %s18, 2
          %s130 = sadd.s32 %s129, %s19
          %p131 = scmp.lt.s32.totalorder %s130, 3
          %s132 = scalar_select %p131, %s130, 3
          %p133 = scmp.lt.s32.totalorder %s132, 3
          %s134 = scalar_select %p133, %s132, 3
          %s135 = smul.addr %s134, 8
          %s136 = scalar_lea.vmem %s1, %s135
          %s137 = smul.u32 %s18, 2
          %s138 = sadd.s32 %s137, %s19
          %p139 = scmp.lt.s32.totalorder %s138, 3
          %s140 = scalar_select %p139, %s138, 3
        $region24: #{tpu_custom_call.1} parent=19 // pred_fallthru
          _
      $region20: #{tpu_custom_call.1} parent=5 // pred_fallthru
        _
      %p141 = scmp.le.s32.totalorder 1, %s11
      %p142 = scmp.lt.s32.totalorder %s11, 5
      %p143 = pnand %p141, %p142
      %p144 = pneg %p143
      // Predicated region
      $region25: #{tpu_custom_call.1} parent=5 // pred_check
        _
      $region26: #{tpu_custom_call.1} parent=5 // pred_check_branch
        %146 = sbr.rel (%p143) target = $region28
      $region27: #{tpu_custom_call.1} parent=5 // pred_region
        %s147 = ssub.s32 %s11, 1
        %p148 = pneg %p44
        %p149 = pneg %p41
        %s150 = smul.u32 %s20, 2
        %s151 = sadd.s32 %s150, %s21
        %p152 = scmp.lt.s32.totalorder %s151, 3
        %s153 = scalar_select %p152, %s151, 3
        %p154 = scmp.lt.s32.totalorder %s153, 3
        %s155 = scalar_select %p154, %s153, 3
        %s156 = smul.addr %s155, 8
        %s157 = scalar_lea.vmem %s1, %s156
        %p158 = pneg %p78
        %p159 = pneg %p75
        %p160 = pneg %p104
        %p161 = pneg %p101
        %s162 = sand.u32 %s91, 1
        %s163 = scalar_lea.sflag [#allocation5], %s162
        %s164 = sand.u32 %s91, 1
        %s165 = smul.addr %s164, 8
        %s166 = scalar_lea.vmem [#allocation4], %s165
        %s167 = smul.u32 %s20, 2
        %s168 = sadd.s32 %s167, %s21
        %p169 = scmp.lt.s32.totalorder %s168, 3
        %s170 = scalar_select %p169, %s168, 3
        %p171 = scmp.lt.s32.totalorder %s170, 3
        %s172 = scalar_select %p171, %s170, 3
        %s173 = smul.addr %s172, 8
        %s174 = scalar_lea.vmem %s1, %s173
        %s175 = smul.u32 %s20, 2
        %s176 = sadd.s32 %s175, %s21
        %p177 = scmp.lt.s32.totalorder %s176, 3
        %s178 = scalar_select %p177, %s176, 3
        %p179 = scmp.eq.s32.totalorder %s21, 0
        // Predicated region
        $region29: #{tpu_custom_call.1} parent=27 // pred_check
          %p180 = pneg %p179
        $region30: #{tpu_custom_call.1} parent=27 // pred_check_branch
          %182 = sbr.rel (%p180) target = $region32
        $region31: #{tpu_custom_call.1} parent=27 // pred_region
          %vm183 = vcmask 7168
          %184 = vst.msk [vmem:[#allocation2] sm:$0xff] %vm183, 0.0
          %185 = vst.msk [vmem:[#allocation3] sm:$0xff] %vm183, 0.0
        $region32: #{tpu_custom_call.1} parent=27 // pred_fallthru
          _
        %v186 = vld [vmem:[%s174] sm:$0xff]
        %vm187 = vcmask 130048
        %v188 = vsel %vm187, %v186, -inf
        %189 = vmax.xlane.f32.xlu0 %v188
        %v190 = vpop.xlane.xlu0 %189
        %v191 = vsub.f32 %v186, %v190
        %v192 = vmul.f32 %v191, 1.442695
        %v193 = vpow.pop %v192
        %v194 = vsel %vm187, %v193, 0.0
        %195 = vadd.xlane.f32.xlu0 %v194
        %v196 = vpop.xlane.xlu0 %195
        %v197 = vlog2.pop %v196
        %v198 = vmul.f32 %v197, 0.6931472
        %v199 = vadd.f32 %v190, %v198
        %v200 = vsel %vm187, %v186, 0.0
        %201 = vadd.xlane.f32.xlu0 %v200
        %v202 = vpop.xlane.xlu0 %201
        %s203 = smul.u32 %s20, 2
        %s204 = sadd.s32 %s203, %s21
        %s205 = smul.u32 %s204, 8
        %s206 = scalar_lea.vmem %s0, %s205
        %v207 = vld [vmem:[%s206] sm:$0xff]
        %v208 = vlaneseq
        %v209 = vand.u32 %v208, 127
        %210 = vset.pattern.permute.xlu0 0
        %211 = vperm.xlu0 %210, %v207
        %v212 = vpop.permute.xlu0 %211
        %vm213 = vcmp.eq.s32.totalorder %v209, %v212
        %v214 = vsel %vm213, %v186, 0.0
        %v215 = vsel %vm187, %v214, 0.0
        %216 = vadd.xlane.f32.xlu0 %v215
        %v217 = vpop.xlane.xlu0 %216
        %v218 = vmul.f32 %v199, 16.0
        %v219 = vsub.f32 %v218, %v202
        %v220 = vsub.f32 %v199, %v217
        %v221 = vlaneseq
        %v222 = vshrl.u32 %v221, 7
        %v223 = vstv %s205
        %v224 = vadd.s32 %v223, %v222
        %vm225 = vcmp.lt.s32.totalorder %v224, 30
        %v226 = vsel %vm225, %v219, 0.0
        %v227 = vsel %vm225, %v220, 0.0
        %v228 = vld [vmem:[#allocation2] sm:$0xff]
        %v229 = vadd.f32 %v228, %v226
        %vm230 = vcmask 7168
        %231 = vst.msk [vmem:[#allocation2] sm:$0xff] %vm230, %v229
        %v232 = vld [vmem:[#allocation3] sm:$0xff]
        %v233 = vadd.f32 %v232, %v227
        %234 = vst.msk [vmem:[#allocation3] sm:$0xff] %vm230, %v233
        %p235 = scmp.eq.s32.totalorder %s21, 1
        // Predicated region
        $region33: #{tpu_custom_call.1} parent=27 // pred_check
          %p236 = pneg %p235
        $region34: #{tpu_custom_call.1} parent=27 // pred_check_branch
          %238 = sbr.rel (%p236) target = $region36
        $region35: #{tpu_custom_call.1} parent=27 // pred_region
          %v239 = vld [vmem:[#allocation2] sm:$0xff]
          %v240 = vsel %vm230, %v239, 0.0
          %241 = vadd.xlane.f32.xlu0 %v240
          %v242 = vpop.xlane.xlu0 %241
          %v243 = vrot.slane %v242, 4
          %v244 = vadd.f32 %v242, %v243
          %v245 = vrot.slane %v244, 2
          %v246 = vadd.f32 %v244, %v245
          %v247 = vrot.slane %v246, 1
          %v248 = vadd.f32 %v246, %v247
          %s249 = vtos %v248
          %v250 = vld [vmem:[#allocation3] sm:$0xff]
          %v251 = vsel %vm230, %v250, 0.0
          %252 = vadd.xlane.f32.xlu0 %v251
          %v253 = vpop.xlane.xlu0 %252
          %v254 = vrot.slane %v253, 4
          %v255 = vadd.f32 %v253, %v254
          %v256 = vrot.slane %v255, 2
          %v257 = vadd.f32 %v255, %v256
          %v258 = vrot.slane %v257, 1
          %v259 = vadd.f32 %v257, %v258
          %s260 = vtos %v259
          %vm261 = vcmp.eq.s32.totalorder %v222, 0
          %vm262 = vcmp.eq.s32.totalorder %v209, 0
          %vm263 = vmand %vm261, %vm262
          %vm264 = vcmp.eq.s32.totalorder %v209, 1
          %vm265 = vmand %vm261, %vm264
          %v266 = vstv %s260
          %v267 = vsel %vm265, %v266, 0.0
          %v268 = vstv %s249
          %v269 = vsel %vm263, %v268, %v267
          %270 = vst [vmem:[%s166] sm:$0xff] %v269
        $region36: #{tpu_custom_call.1} parent=27 // pred_fallthru
          _
        %s271 = sand.u32 %s91, 1
        %s272 = scalar_lea.sflag [#allocation5], %s271
        %s273 = sand.u32 %s91, 1
        %s274 = smul.addr %s273, 8
        %s275 = scalar_lea.vmem [#allocation4], %s274
        // Predicated region
        $region37: #{tpu_custom_call.1} parent=27 // pred_check
          %p276 = pneg %p101
        $region38: #{tpu_custom_call.1} parent=27 // pred_check_branch
          %278 = sbr.rel (%p276) target = $region40
        $region39: #{tpu_custom_call.1} parent=27 // pred_region
          %s280 = ssub.s32 128, 128
          %281 = vsyncadd %s272, %s280
          %s282 = smul.addr %s20, 128
          %s283 = scalar_lea.hbm %s2, %s282
          %s285 = sshll.u32 %s275, 4
          %s286 = int_to_ptr.vmem [resolvable:$true] %s285
          %288 = dma.vmem_to_hbm [thread:$0]  %s286, 128, %s283, %s272
        $region40: #{tpu_custom_call.1} parent=27 // pred_fallthru
          _
      $region28: #{tpu_custom_call.1} parent=5 // pred_fallthru
        _
      %p289 = scmp.le.s32.totalorder 2, %s11
      // Predicated region
      $region41: #{tpu_custom_call.1} parent=5 // pred_check
        %p290 = pneg %p289
      $region42: #{tpu_custom_call.1} parent=5 // pred_check_branch
        %292 = sbr.rel (%p290) target = $region44
      $region43: #{tpu_custom_call.1} parent=5 // pred_region
        %s293 = ssub.s32 %s11, 2
        // Predicated region
        $region45: #{tpu_custom_call.1} parent=43 // pred_check
          %p294 = pneg %p107
        $region46: #{tpu_custom_call.1} parent=43 // pred_check_branch
          %296 = sbr.rel (%p294) target = $region48
        $region47: #{tpu_custom_call.1} parent=43 // pred_region
          %s297 = sand.u32 %s92, 1
          %s298 = scalar_lea.sflag [#allocation5], %s297
          %s299 = sand.u32 %s92, 1
          %s300 = smul.addr %s299, 8
          %s301 = scalar_lea.vmem [#allocation4], %s300
          %302 = dma.done %s298, 128
        $region48: #{tpu_custom_call.1} parent=43 // pred_fallthru
          _
      $region44: #{tpu_custom_call.1} parent=5 // pred_fallthru
        _
    $region6: #{tpu_custom_call.1} parent=1 // loop_footer
      %s15 = sadd.s32 1, %s11
    $region7: #{tpu_custom_call.1} parent=1 // loop_footer_branch
      %10 = sbr.rel target = $region3
    $region8: #{tpu_custom_call.1} parent=1 // loop_exit
      _
    %303 = vsyncpa [#allocation5], 1
    %s304 = scalar_lea.sflag [#allocation5], 1
    %305 = vsyncpa %s304, 1

</llo_original>
